<compile_context>
chip_gen: v7x
topology: tpu7x:2x2x1
jax: 0.10.0
libtpu: 0.0.40
codegen_flags: <defaults>
</compile_context>

<pallas_src>
import jax
import jax.numpy as jnp
from jax.experimental import pallas as pl
from jax.experimental.pallas import tpu as pltpu


def _round_up(n, m):
    return ((n + m - 1) // m) * m


def mlp_kernel(x_ref, w1_ref, b1_ref, w2_ref, b2_ref, o_ref):
    # fc1: [TB, D](bf16) @ [D, 32](bf16) -> f32 accumulate on the MXU.
    h = jnp.dot(x_ref[...], w1_ref[...], preferred_element_type=jnp.float32)
    # sigmoid -> exp/recip land on the EUP, which is idle while DMA dominates.
    h = jax.nn.sigmoid(h + b1_ref[...])
    # fc2: [TB, 32](f32) @ [32, N_pad](f32) + bias  (lane-dense 128-wide output slab).
    out = jnp.dot(h, w2_ref[...], preferred_element_type=jnp.float32)
    o_ref[...] = (out + b2_ref[...]).astype(o_ref.dtype)


def mlp_1_sigmo_forward(x, w1, b1, w2, b2, *, tb=2048):
    """Forward pass. x: any shape whose trailing dims flatten to input_size.

    Ideally the producer already hands x over as bf16 (casting here is an extra
    XLA pass over x); the kernel itself only ever reads bf16 x from HBM.
    """
    input_size, hidden = w1.shape
    num_classes = w2.shape[1]

    # Glue: torch's x.view(-1, input_size); stream x to the kernel in bf16.
    xf = x.reshape(-1, input_size)
    if xf.dtype != jnp.bfloat16:
        xf = xf.astype(jnp.bfloat16)
    B = xf.shape[0]

    # Resident fc1 weight in bf16 (tiny, fast MXU path); biases / fc2 stay f32.
    w1c = w1.astype(jnp.bfloat16)
    b1c = b1.reshape(1, hidden).astype(jnp.float32)

    # Lane-dense output: pad class dim to a multiple of 128 with zero weights/bias.
    N_pad = _round_up(num_classes, 128)
    w2c = w2.astype(jnp.float32)
    b2c = b2.reshape(1, num_classes).astype(jnp.float32)
    if N_pad != num_classes:
        w2c = jnp.pad(w2c, ((0, 0), (0, N_pad - num_classes)))
        b2c = jnp.pad(b2c, ((0, 0), (0, N_pad - num_classes)))

    # Batch tile: 16-row granularity (bf16 sublane packing), capped at `tb`,
    # floored at 512 rows, and sized so mid/large batches get >= 2-4 grid steps
    # (so v7x's 2 TensorCores both get work and DMA/compute overlap).
    tb = max(16, (tb // 16) * 16)
    b_r = _round_up(B, 16)
    desired = _round_up(-(-b_r // 4), 16)          # ~cdiv(B, 4), 16-row aligned
    TB = min(tb, max(min(512, b_r), desired))

    grid = (pl.cdiv(B, TB),)                       # ragged last block handled by Pallas

    flops = 2 * B * input_size * hidden + 2 * B * hidden * N_pad
    bytes_accessed = (
        2 * B * input_size          # x (bf16)
        + 2 * input_size * hidden   # w1 (bf16)
        + 4 * hidden                # b1
        + 4 * hidden * N_pad        # w2
        + 4 * N_pad                 # b2
        + 4 * B * N_pad             # out (f32)
    )

    out = pl.pallas_call(
        mlp_kernel,
        out_shape=jax.ShapeDtypeStruct((B, N_pad), jnp.float32),
        grid=grid,
        in_specs=[
            # x: streamed per batch tile (auto double-buffered).
            pl.BlockSpec((TB, input_size), lambda i: (i, 0)),
            # Weights / biases: constant block index -> DMA'd once, resident in VMEM.
            pl.BlockSpec((input_size, hidden), lambda i: (0, 0)),
            pl.BlockSpec((1, hidden), lambda i: (0, 0)),
            pl.BlockSpec((hidden, N_pad), lambda i: (0, 0)),
            pl.BlockSpec((1, N_pad), lambda i: (0, 0)),
        ],
        out_specs=pl.BlockSpec((TB, N_pad), lambda i: (i, 0)),
        compiler_params=pltpu.CompilerParams(
            dimension_semantics=("parallel",),     # lets v7x shard the batch axis across 2 TCs
            vmem_limit_bytes=48 * 1024 * 1024,     # headroom; actual usage ~10-11 MiB at TB=2048
        ),
        cost_estimate=pl.CostEstimate(
            flops=flops,
            transcendentals=2 * B * hidden,        # sigmoid ~ exp + reciprocal per element
            bytes_accessed=bytes_accessed,
        ),
    )(xf, w1c, b1c, w2c, b2c)

    return out[:, :num_classes]


def init_params(key, input_size, num_classes, hidden=32):
    """Deterministic init mimicking torch.nn.Linear (uniform(-1/sqrt(fan_in), ...))."""
    k1, k2, k3, k4 = jax.random.split(key, 4)
    bound1 = 1.0 / jnp.sqrt(jnp.float32(input_size))
    bound2 = 1.0 / jnp.sqrt(jnp.float32(hidden))
    # Stored transposed relative to torch's (out, in) layout.
    w1 = jax.random.uniform(k1, (input_size, hidden), jnp.float32, -bound1, bound1)
    b1 = jax.random.uniform(k2, (1, hidden), jnp.float32, -bound1, bound1)
    w2 = jax.random.uniform(k3, (hidden, num_classes), jnp.float32, -bound2, bound2)
    b2 = jax.random.uniform(k4, (1, num_classes), jnp.float32, -bound2, bound2)
    return w1, b1, w2, b2


if __name__ == "__main__":
    key = jax.random.PRNGKey(0)
    kx, kp = jax.random.split(key)

    # Small, module-consistent shapes: x is NCHW [2, 4, 16, 16] -> input_size = 4*16*16 = 1024
    B, C, H, W = 2, 4, 16, 16
    input_size = C * H * W
    num_classes = 10

    x = jax.random.normal(kx, (B, C, H, W), jnp.float32)
    w1, b1, w2, b2 = init_params(kp, input_size, num_classes)

    out = mlp_1_sigmo_forward(x, w1, b1, w2, b2)
    out = jax.block_until_ready(out)
    assert out.shape == (B, num_classes)

    # Reference 1: same math with the same bf16 cast of x / w1 (tight tolerance).
    xf = x.reshape(-1, input_size)
    xb = xf.astype(jnp.bfloat16).astype(jnp.float32)
    w1b = w1.astype(jnp.bfloat16).astype(jnp.float32)
    h_ref = jax.nn.sigmoid(xb @ w1b + b1)
    ref_bf16 = h_ref @ w2 + b2
    assert jnp.allclose(out, ref_bf16, atol=1e-3, rtol=1e-3)

    # Reference 2: pure f32 torch-equivalent forward (loose tolerance; bf16 x/w1 quantization).
    ref_f32 = jax.nn.sigmoid(xf @ w1 + b1) @ w2 + b2
    assert jnp.allclose(out, ref_f32, atol=1e-2, rtol=1e-2)

    print("KERNEL_OK")
</pallas_src>

<mosaic_0001>
module attributes {stable_mosaic.version = 11 : i64} {
  func.func @mlp_kernel(%arg0: i32, %arg1: memref<16x1024xbf16, #tpu.memory_space<vmem>>, %arg2: memref<1024x32xbf16, #tpu.memory_space<vmem>>, %arg3: memref<1x32xf32, #tpu.memory_space<vmem>>, %arg4: memref<32x128xf32, #tpu.memory_space<vmem>>, %arg5: memref<1x128xf32, #tpu.memory_space<vmem>>, %arg6: memref<16x128xf32, #tpu.memory_space<vmem>>) attributes {dimension_semantics = [#tpu.dimension_semantics<parallel>], iteration_bounds = array<i64: 1>, scalar_prefetch = 0 : i64, scratch_operands = 0 : i64, tpu.core_type = #tpu.core_type<tc>, window_params = [{transform_indices = @transform_0, window_bounds = array<i64: 16, 1024>}, {pipeline_mode = #tpu.pipeline_mode<synchronous>, transform_indices = @transform_1, window_bounds = array<i64: 1024, 32>}, {pipeline_mode = #tpu.pipeline_mode<synchronous>, transform_indices = @transform_2, window_bounds = array<i64: 1, 32>}, {pipeline_mode = #tpu.pipeline_mode<synchronous>, transform_indices = @transform_3, window_bounds = array<i64: 32, 128>}, {pipeline_mode = #tpu.pipeline_mode<synchronous>, transform_indices = @transform_4, window_bounds = array<i64: 1, 128>}, {transform_indices = @transform_5, window_bounds = array<i64: 16, 128>}]} {
    %c0 = arith.constant 0 : index
    %c0_0 = arith.constant 0 : index
    %0 = vector.load %arg1[%c0, %c0_0] : memref<16x1024xbf16, #tpu.memory_space<vmem>>, vector<16x1024xbf16>
    %c0_1 = arith.constant 0 : index
    %c0_2 = arith.constant 0 : index
    %1 = vector.load %arg2[%c0_1, %c0_2] : memref<1024x32xbf16, #tpu.memory_space<vmem>>, vector<1024x32xbf16>
    %cst = arith.constant dense<0.000000e+00> : vector<16x32xf32>
    %2 = tpu.matmul %0, %1, %cst {dimension_numbers = #tpu.dot_dimension_numbers<[1], [0], [0], [1], [0, 0, 1, 1], [], []>} : vector<16x1024xbf16>, vector<1024x32xbf16>, vector<16x32xf32> -> vector<16x32xf32>
    %c0_3 = arith.constant 0 : index
    %c0_4 = arith.constant 0 : index
    %3 = vector.load %arg3[%c0_3, %c0_4] : memref<1x32xf32, #tpu.memory_space<vmem>>, vector<1x32xf32>
    %4 = vector.broadcast %3 : vector<1x32xf32> to vector<16x32xf32>
    %5 = arith.addf %2, %4 : vector<16x32xf32>
    %6 = arith.negf %5 : vector<16x32xf32>
    %7 = math.exp %6 : vector<16x32xf32>
    %cst_5 = arith.constant 1.000000e+00 : f32
    %8 = vector.broadcast %cst_5 : f32 to vector<16x32xf32>
    %9 = arith.addf %8, %7 : vector<16x32xf32>
    %10 = arith.divf %8, %9 : vector<16x32xf32>
    %c0_6 = arith.constant 0 : index
    %c0_7 = arith.constant 0 : index
    %11 = vector.load %arg4[%c0_6, %c0_7] : memref<32x128xf32, #tpu.memory_space<vmem>>, vector<32x128xf32>
    %cst_8 = arith.constant dense<0.000000e+00> : vector<16x128xf32>
    %12 = tpu.matmul %10, %11, %cst_8 {dimension_numbers = #tpu.dot_dimension_numbers<[1], [0], [0], [1], [0, 0, 1, 1], [], []>} : vector<16x32xf32>, vector<32x128xf32>, vector<16x128xf32> -> vector<16x128xf32>
    %c0_9 = arith.constant 0 : index
    %c0_10 = arith.constant 0 : index
    %13 = vector.load %arg5[%c0_9, %c0_10] : memref<1x128xf32, #tpu.memory_space<vmem>>, vector<1x128xf32>
    %14 = vector.broadcast %13 : vector<1x128xf32> to vector<16x128xf32>
    %15 = arith.addf %12, %14 : vector<16x128xf32>
    %c0_11 = arith.constant 0 : index
    %c0_12 = arith.constant 0 : index
    %16 = vector.load %arg6[%c0_11, %c0_12] : memref<16x128xf32, #tpu.memory_space<vmem>>, vector<16x128xf32>
    tpu.vector_store %arg6[%c0_11, %c0_12], %15 {strides = array<i32>} : memref<16x128xf32, #tpu.memory_space<vmem>>, vector<16x128xf32>,
    return
  }
  func.func @transform_0(%arg0: i32) -> (i32, i32) {
    %c0_i32 = arith.constant 0 : i32
    %c0_i32_0 = arith.constant 0 : i32
    return %arg0, %c0_i32 : i32, i32
  }
  func.func @transform_1(%arg0: i32) -> (i32, i32) {
    %c0_i32 = arith.constant 0 : i32
    %c0_i32_0 = arith.constant 0 : i32
    %c0_i32_1 = arith.constant 0 : i32
    return %c0_i32, %c0_i32_0 : i32, i32
  }
  func.func @transform_2(%arg0: i32) -> (i32, i32) {
    %c0_i32 = arith.constant 0 : i32
    %c0_i32_0 = arith.constant 0 : i32
    %c0_i32_1 = arith.constant 0 : i32
    return %c0_i32, %c0_i32_0 : i32, i32
  }
  func.func @transform_3(%arg0: i32) -> (i32, i32) {
    %c0_i32 = arith.constant 0 : i32
    %c0_i32_0 = arith.constant 0 : i32
    %c0_i32_1 = arith.constant 0 : i32
    return %c0_i32, %c0_i32_0 : i32, i32
  }
  func.func @transform_4(%arg0: i32) -> (i32, i32) {
    %c0_i32 = arith.constant 0 : i32
    %c0_i32_0 = arith.constant 0 : i32
    %c0_i32_1 = arith.constant 0 : i32
    return %c0_i32, %c0_i32_0 : i32, i32
  }
  func.func @transform_5(%arg0: i32) -> (i32, i32) {
    %c0_i32 = arith.constant 0 : i32
    %c0_i32_0 = arith.constant 0 : i32
    return %arg0, %c0_i32 : i32, i32
  }
}

</mosaic_0001>

<llo_original>
// kernel: tpu_custom_call.1
$region0: #{tpu_custom_call.1}
  #allocation0 [shape = 'u32[]', space=smem, size = 0x4, offset = 0x4, fixed_abs, tag = 'smem constant byte address 0x4 - core index']
  #allocation1 [shape = 'u32[144,128]{1,0:T(1,128)}', space=vmem, size = 0x12000, scoped, tag = 'internal scratch']
  %s0 = inlined_call_operand.vmem [shape: bf16[2,1024], index: 0, kind: input, shape index: {}]
  %s1 = inlined_call_operand.vmem [shape: bf16[1024,32], index: 1, kind: input, shape index: {}]
  %s2 = inlined_call_operand.vmem [shape: f32[1,32], index: 2, kind: input, shape index: {}]
  %s3 = inlined_call_operand.vmem [shape: f32[32,128], index: 3, kind: input, shape index: {}]
  %s4 = inlined_call_operand.vmem [shape: f32[1,128], index: 4, kind: input, shape index: {}]
  %s5 = inlined_call_operand.hbm [shape: f32[2,128], index: 5, kind: output, shape index: {}]
  %s6 = sld [smem:[#allocation0]]
  $region30: #{tpu_custom_call.1} parent=0
    _
  %s8 = ssub.s32 1, %s6
  %s9 = scalar_select 0, %s8, %s6
  $region1: #{tpu_custom_call.1} parent=0
    #allocation2 [shape = 'u8[8192]{0}', space=vmem, size = 0x2000, scoped, tag = 'output window, operand 0, single buffered']
    #allocation3 [shape = 's32[1]{0}', space=sflag, size = 0x4, scoped, tag = 'scoped memory for tpu_custom_call.1']
    %10 = vsyncpa [#allocation3], 0
    // Predicated region
    $region2: #{tpu_custom_call.1} parent=1 // pred_check
      _
    $region3: #{tpu_custom_call.1} parent=1 // pred_check_branch
      %12 = sbr.rel (0) target = $region5
    $region4: #{tpu_custom_call.1} parent=1 // pred_region
      _
    $region5: #{tpu_custom_call.1} parent=1 // pred_fallthru
      _
    // Predicated region
    $region6: #{tpu_custom_call.1} parent=1 // pred_check
      _
    $region7: #{tpu_custom_call.1} parent=1 // pred_check_branch
      %14 = sbr.rel (0) target = $region9
    $region8: #{tpu_custom_call.1} parent=1 // pred_region
      _
    $region9: #{tpu_custom_call.1} parent=1 // pred_fallthru
      _
    // Predicated region
    $region10: #{tpu_custom_call.1} parent=1 // pred_check
      _
    $region11: #{tpu_custom_call.1} parent=1 // pred_check_branch
      %16 = sbr.rel (0) target = $region13
    $region12: #{tpu_custom_call.1} parent=1 // pred_region
      _
    $region13: #{tpu_custom_call.1} parent=1 // pred_fallthru
      _
    // Predicated region
    $region14: #{tpu_custom_call.1} parent=1 // pred_check
      _
    $region15: #{tpu_custom_call.1} parent=1 // pred_check_branch
      %18 = sbr.rel (0) target = $region17
    $region16: #{tpu_custom_call.1} parent=1 // pred_region
      _
    $region17: #{tpu_custom_call.1} parent=1 // pred_fallthru
      _
    // Predicated region
    $region18: #{tpu_custom_call.1} parent=1 // pred_check
      _
    $region19: #{tpu_custom_call.1} parent=1 // pred_check_branch
      %20 = sbr.rel (0) target = $region21
    $region20: #{tpu_custom_call.1} parent=1 // pred_region
      _
    $region21: #{tpu_custom_call.1} parent=1 // pred_fallthru
      _
    %v22 = vld [vmem:[%s0] sm:$0xff]
    %v23 = vld [vmem:[%s0 + $0x8] sm:$0xff]
    %v24 = vld [vmem:[%s0 + $0x10] sm:$0xff]
    %v25 = vld [vmem:[%s0 + $0x18] sm:$0xff]
    %v26 = vld [vmem:[%s0 + $0x20] sm:$0xff]
    %v27 = vld [vmem:[%s0 + $0x28] sm:$0xff]
    %v28 = vld [vmem:[%s0 + $0x30] sm:$0xff]
    %v29 = vld [vmem:[%s0 + $0x38] sm:$0xff]
    %v30 = vld [vmem:[%s1] sm:$0xf]
    %v31 = vld [vmem:[%s1 + $0x4] sm:$0xf]
    %v32 = vld [vmem:[%s1 + $0x8] sm:$0xf]
    %v33 = vld [vmem:[%s1 + $0xc] sm:$0xf]
    %v34 = vld [vmem:[%s1 + $0x10] sm:$0xf]
    %v35 = vld [vmem:[%s1 + $0x14] sm:$0xf]
    %v36 = vld [vmem:[%s1 + $0x18] sm:$0xf]
    %v37 = vld [vmem:[%s1 + $0x1c] sm:$0xf]
    %v38 = vld [vmem:[%s1 + $0x20] sm:$0xf]
    %v39 = vld [vmem:[%s1 + $0x24] sm:$0xf]
    %v40 = vld [vmem:[%s1 + $0x28] sm:$0xf]
    %v41 = vld [vmem:[%s1 + $0x2c] sm:$0xf]
    %v42 = vld [vmem:[%s1 + $0x30] sm:$0xf]
    %v43 = vld [vmem:[%s1 + $0x34] sm:$0xf]
    %v44 = vld [vmem:[%s1 + $0x38] sm:$0xf]
    %v45 = vld [vmem:[%s1 + $0x3c] sm:$0xf]
    %v46 = vld [vmem:[%s1 + $0x40] sm:$0xf]
    %v47 = vld [vmem:[%s1 + $0x44] sm:$0xf]
    %v48 = vld [vmem:[%s1 + $0x48] sm:$0xf]
    %v49 = vld [vmem:[%s1 + $0x4c] sm:$0xf]
    %v50 = vld [vmem:[%s1 + $0x50] sm:$0xf]
    %v51 = vld [vmem:[%s1 + $0x54] sm:$0xf]
    %v52 = vld [vmem:[%s1 + $0x58] sm:$0xf]
    %v53 = vld [vmem:[%s1 + $0x5c] sm:$0xf]
    %v54 = vld [vmem:[%s1 + $0x60] sm:$0xf]
    %v55 = vld [vmem:[%s1 + $0x64] sm:$0xf]
    %v56 = vld [vmem:[%s1 + $0x68] sm:$0xf]
    %v57 = vld [vmem:[%s1 + $0x6c] sm:$0xf]
    %v58 = vld [vmem:[%s1 + $0x70] sm:$0xf]
    %v59 = vld [vmem:[%s1 + $0x74] sm:$0xf]
    %v60 = vld [vmem:[%s1 + $0x78] sm:$0xf]
    %v61 = vld [vmem:[%s1 + $0x7c] sm:$0xf]
    %v62 = vld [vmem:[%s1 + $0x80] sm:$0xf]
    %v63 = vld [vmem:[%s1 + $0x84] sm:$0xf]
    %v64 = vld [vmem:[%s1 + $0x88] sm:$0xf]
    %v65 = vld [vmem:[%s1 + $0x8c] sm:$0xf]
    %v66 = vld [vmem:[%s1 + $0x90] sm:$0xf]
    %v67 = vld [vmem:[%s1 + $0x94] sm:$0xf]
    %v68 = vld [vmem:[%s1 + $0x98] sm:$0xf]
    %v69 = vld [vmem:[%s1 + $0x9c] sm:$0xf]
    %v70 = vld [vmem:[%s1 + $0xa0] sm:$0xf]
    %v71 = vld [vmem:[%s1 + $0xa4] sm:$0xf]
    %v72 = vld [vmem:[%s1 + $0xa8] sm:$0xf]
    %v73 = vld [vmem:[%s1 + $0xac] sm:$0xf]
    %v74 = vld [vmem:[%s1 + $0xb0] sm:$0xf]
    %v75 = vld [vmem:[%s1 + $0xb4] sm:$0xf]
    %v76 = vld [vmem:[%s1 + $0xb8] sm:$0xf]
    %v77 = vld [vmem:[%s1 + $0xbc] sm:$0xf]
    %v78 = vld [vmem:[%s1 + $0xc0] sm:$0xf]
    %v79 = vld [vmem:[%s1 + $0xc4] sm:$0xf]
    %v80 = vld [vmem:[%s1 + $0xc8] sm:$0xf]
    %v81 = vld [vmem:[%s1 + $0xcc] sm:$0xf]
    %v82 = vld [vmem:[%s1 + $0xd0] sm:$0xf]
    %v83 = vld [vmem:[%s1 + $0xd4] sm:$0xf]
    %v84 = vld [vmem:[%s1 + $0xd8] sm:$0xf]
    %v85 = vld [vmem:[%s1 + $0xdc] sm:$0xf]
    %v86 = vld [vmem:[%s1 + $0xe0] sm:$0xf]
    %v87 = vld [vmem:[%s1 + $0xe4] sm:$0xf]
    %v88 = vld [vmem:[%s1 + $0xe8] sm:$0xf]
    %v89 = vld [vmem:[%s1 + $0xec] sm:$0xf]
    %v90 = vld [vmem:[%s1 + $0xf0] sm:$0xf]
    %v91 = vld [vmem:[%s1 + $0xf4] sm:$0xf]
    %v92 = vld [vmem:[%s1 + $0xf8] sm:$0xf]
    %v93 = vld [vmem:[%s1 + $0xfc] sm:$0xf]
    %v94 = vld [vmem:[%s1 + $0x100] sm:$0xf]
    %v95 = vld [vmem:[%s1 + $0x104] sm:$0xf]
    %v96 = vld [vmem:[%s1 + $0x108] sm:$0xf]
    %v97 = vld [vmem:[%s1 + $0x10c] sm:$0xf]
    %v98 = vld [vmem:[%s1 + $0x110] sm:$0xf]
    %v99 = vld [vmem:[%s1 + $0x114] sm:$0xf]
    %v100 = vld [vmem:[%s1 + $0x118] sm:$0xf]
    %v101 = vld [vmem:[%s1 + $0x11c] sm:$0xf]
    %v102 = vld [vmem:[%s1 + $0x120] sm:$0xf]
    %v103 = vld [vmem:[%s1 + $0x124] sm:$0xf]
    %v104 = vld [vmem:[%s1 + $0x128] sm:$0xf]
    %v105 = vld [vmem:[%s1 + $0x12c] sm:$0xf]
    %v106 = vld [vmem:[%s1 + $0x130] sm:$0xf]
    %v107 = vld [vmem:[%s1 + $0x134] sm:$0xf]
    %v108 = vld [vmem:[%s1 + $0x138] sm:$0xf]
    %v109 = vld [vmem:[%s1 + $0x13c] sm:$0xf]
    %v110 = vld [vmem:[%s1 + $0x140] sm:$0xf]
    %v111 = vld [vmem:[%s1 + $0x144] sm:$0xf]
    %v112 = vld [vmem:[%s1 + $0x148] sm:$0xf]
    %v113 = vld [vmem:[%s1 + $0x14c] sm:$0xf]
    %v114 = vld [vmem:[%s1 + $0x150] sm:$0xf]
    %v115 = vld [vmem:[%s1 + $0x154] sm:$0xf]
    %v116 = vld [vmem:[%s1 + $0x158] sm:$0xf]
    %v117 = vld [vmem:[%s1 + $0x15c] sm:$0xf]
    %v118 = vld [vmem:[%s1 + $0x160] sm:$0xf]
    %v119 = vld [vmem:[%s1 + $0x164] sm:$0xf]
    %v120 = vld [vmem:[%s1 + $0x168] sm:$0xf]
    %v121 = vld [vmem:[%s1 + $0x16c] sm:$0xf]
    %v122 = vld [vmem:[%s1 + $0x170] sm:$0xf]
    %v123 = vld [vmem:[%s1 + $0x174] sm:$0xf]
    %v124 = vld [vmem:[%s1 + $0x178] sm:$0xf]
    %v125 = vld [vmem:[%s1 + $0x17c] sm:$0xf]
    %v126 = vld [vmem:[%s1 + $0x180] sm:$0xf]
    %v127 = vld [vmem:[%s1 + $0x184] sm:$0xf]
    %v128 = vld [vmem:[%s1 + $0x188] sm:$0xf]
    %v129 = vld [vmem:[%s1 + $0x18c] sm:$0xf]
    %v130 = vld [vmem:[%s1 + $0x190] sm:$0xf]
    %v131 = vld [vmem:[%s1 + $0x194] sm:$0xf]
    %v132 = vld [vmem:[%s1 + $0x198] sm:$0xf]
    %v133 = vld [vmem:[%s1 + $0x19c] sm:$0xf]
    %v134 = vld [vmem:[%s1 + $0x1a0] sm:$0xf]
    %v135 = vld [vmem:[%s1 + $0x1a4] sm:$0xf]
    %v136 = vld [vmem:[%s1 + $0x1a8] sm:$0xf]
    %v137 = vld [vmem:[%s1 + $0x1ac] sm:$0xf]
    %v138 = vld [vmem:[%s1 + $0x1b0] sm:$0xf]
    %v139 = vld [vmem:[%s1 + $0x1b4] sm:$0xf]
    %v140 = vld [vmem:[%s1 + $0x1b8] sm:$0xf]
    %v141 = vld [vmem:[%s1 + $0x1bc] sm:$0xf]
    %v142 = vld [vmem:[%s1 + $0x1c0] sm:$0xf]
    %v143 = vld [vmem:[%s1 + $0x1c4] sm:$0xf]
    %v144 = vld [vmem:[%s1 + $0x1c8] sm:$0xf]
    %v145 = vld [vmem:[%s1 + $0x1cc] sm:$0xf]
    %v146 = vld [vmem:[%s1 + $0x1d0] sm:$0xf]
    %v147 = vld [vmem:[%s1 + $0x1d4] sm:$0xf]
    %v148 = vld [vmem:[%s1 + $0x1d8] sm:$0xf]
    %v149 = vld [vmem:[%s1 + $0x1dc] sm:$0xf]
    %v150 = vld [vmem:[%s1 + $0x1e0] sm:$0xf]
    %v151 = vld [vmem:[%s1 + $0x1e4] sm:$0xf]
    %v152 = vld [vmem:[%s1 + $0x1e8] sm:$0xf]
    %v153 = vld [vmem:[%s1 + $0x1ec] sm:$0xf]
    %v154 = vld [vmem:[%s1 + $0x1f0] sm:$0xf]
    %v155 = vld [vmem:[%s1 + $0x1f4] sm:$0xf]
    %v156 = vld [vmem:[%s1 + $0x1f8] sm:$0xf]
    %v157 = vld [vmem:[%s1 + $0x1fc] sm:$0xf]
    %v158 = vld [vmem:[%s2] sm:$0x1]
    %v160 = vlaneseq
    %v161 = vshrl.u32 %v160, 7
    %v162 = vsub.s32 0, %v161
    %v163 = vrot.slane %v158, %v162
    %v173 = vcombine.low %v22, %v23
    %v174 = vcombine.high %v22, %v23
    %v175 = vcombine.low %v24, %v25
    %v176 = vcombine.high %v24, %v25
    %v177 = vcombine.low %v26, %v27
    %v178 = vcombine.high %v26, %v27
    %v179 = vcombine.low %v28, %v29
    %v180 = vcombine.high %v28, %v29
    %v182 = vunpack.c.l.s4 1966171168
    %v183 = vunpack.c.0.s8 %v182
    %v184 = vlaneseq
    %v185 = vshrl.u32 %v184, 7
    %v186 = vsub.s32 %v183, %v185
    %v187 = vrot.slane %v173, %v186
    %v189 = vunpack.c.l.s4 1966171168
    %v190 = vunpack.c.0.s8 %v189
    %v191 = vlaneseq
    %v192 = vshrl.u32 %v191, 7
    %v193 = vsub.s32 %v190, %v192
    %v194 = vrot.slane %v174, %v193
    %v196 = vunpack.c.l.s4 1966171168
    %v197 = vunpack.c.0.s8 %v196
    %v198 = vlaneseq
    %v199 = vshrl.u32 %v198, 7
    %v200 = vsub.s32 %v197, %v199
    %v201 = vrot.slane %v175, %v200
    %v203 = vunpack.c.l.s4 1966171168
    %v204 = vunpack.c.0.s8 %v203
    %v205 = vlaneseq
    %v206 = vshrl.u32 %v205, 7
    %v207 = vsub.s32 %v204, %v206
    %v208 = vrot.slane %v176, %v207
    %v210 = vunpack.c.l.s4 1966171168
    %v211 = vunpack.c.0.s8 %v210
    %v212 = vlaneseq
    %v213 = vshrl.u32 %v212, 7
    %v214 = vsub.s32 %v211, %v213
    %v215 = vrot.slane %v177, %v214
    %v217 = vunpack.c.l.s4 1966171168
    %v218 = vunpack.c.0.s8 %v217
    %v219 = vlaneseq
    %v220 = vshrl.u32 %v219, 7
    %v221 = vsub.s32 %v218, %v220
    %v222 = vrot.slane %v178, %v221
    %v224 = vunpack.c.l.s4 1966171168
    %v225 = vunpack.c.0.s8 %v224
    %v226 = vlaneseq
    %v227 = vshrl.u32 %v226, 7
    %v228 = vsub.s32 %v225, %v227
    %v229 = vrot.slane %v179, %v228
    %v231 = vunpack.c.l.s4 1966171168
    %v232 = vunpack.c.0.s8 %v231
    %v233 = vlaneseq
    %v234 = vshrl.u32 %v233, 7
    %v235 = vsub.s32 %v232, %v234
    %v236 = vrot.slane %v180, %v235
    %v237 = vcombine.low %v187, %v201
    %v238 = vcombine.high %v187, %v201
    %v239 = vcombine.low %v194, %v208
    %v240 = vcombine.high %v194, %v208
    %v241 = vcombine.low %v215, %v229
    %v242 = vcombine.high %v215, %v229
    %v243 = vcombine.low %v222, %v236
    %v244 = vcombine.high %v222, %v236
    %v246 = vunpack.c.l.s4 1966171168
    %v247 = vunpack.c.0.s8 %v246
    %v248 = vlaneseq
    %v249 = vshrl.u32 %v248, 7
    %v250 = vsub.s32 %v247, %v249
    %v251 = vrot.slane %v237, %v250
    %v253 = vunpack.c.l.s4 1966171168
    %v254 = vunpack.c.0.s8 %v253
    %v255 = vlaneseq
    %v256 = vshrl.u32 %v255, 7
    %v257 = vsub.s32 %v254, %v256
    %v258 = vrot.slane %v239, %v257
    %v260 = vunpack.c.l.s4 1966171168
    %v261 = vunpack.c.0.s8 %v260
    %v262 = vlaneseq
    %v263 = vshrl.u32 %v262, 7
    %v264 = vsub.s32 %v261, %v263
    %v265 = vrot.slane %v238, %v264
    %v267 = vunpack.c.l.s4 1966171168
    %v268 = vunpack.c.0.s8 %v267
    %v269 = vlaneseq
    %v270 = vshrl.u32 %v269, 7
    %v271 = vsub.s32 %v268, %v270
    %v272 = vrot.slane %v240, %v271
    %v274 = vunpack.c.l.s4 1966171168
    %v275 = vunpack.c.0.s8 %v274
    %v276 = vlaneseq
    %v277 = vshrl.u32 %v276, 7
    %v278 = vsub.s32 %v275, %v277
    %v279 = vrot.slane %v241, %v278
    %v281 = vunpack.c.l.s4 1966171168
    %v282 = vunpack.c.0.s8 %v281
    %v283 = vlaneseq
    %v284 = vshrl.u32 %v283, 7
    %v285 = vsub.s32 %v282, %v284
    %v286 = vrot.slane %v243, %v285
    %v288 = vunpack.c.l.s4 1966171168
    %v289 = vunpack.c.0.s8 %v288
    %v290 = vlaneseq
    %v291 = vshrl.u32 %v290, 7
    %v292 = vsub.s32 %v289, %v291
    %v293 = vrot.slane %v242, %v292
    %v295 = vunpack.c.l.s4 1966171168
    %v296 = vunpack.c.0.s8 %v295
    %v297 = vlaneseq
    %v298 = vshrl.u32 %v297, 7
    %v299 = vsub.s32 %v296, %v298
    %v300 = vrot.slane %v244, %v299
    %v301 = vcombine.low %v251, %v279
    %v302 = vcombine.high %v251, %v279
    %v303 = vcombine.low %v258, %v286
    %v304 = vcombine.high %v258, %v286
    %v305 = vcombine.low %v265, %v293
    %v306 = vcombine.high %v265, %v293
    %v307 = vcombine.low %v272, %v300
    %v308 = vcombine.high %v272, %v300
    %v445 = vunpack.c.l.b16 %v30
    %v446 = vunpack.c.l.b16 %v31
    %v447 = vunpack.c.l.b16 %v32
    %v448 = vunpack.c.l.b16 %v33
    %v449 = vunpack.c.l.b16 %v34
    %v450 = vunpack.c.l.b16 %v35
    %v451 = vunpack.c.l.b16 %v36
    %v452 = vunpack.c.l.b16 %v37
    %v453 = vunpack.c.l.b16 %v38
    %v454 = vunpack.c.l.b16 %v39
    %v455 = vunpack.c.l.b16 %v40
    %v456 = vunpack.c.l.b16 %v41
    %v457 = vunpack.c.l.b16 %v42
    %v458 = vunpack.c.l.b16 %v43
    %v459 = vunpack.c.l.b16 %v44
    %v460 = vunpack.c.l.b16 %v45
    %v461 = vunpack.c.l.b16 %v46
    %v462 = vunpack.c.l.b16 %v47
    %v463 = vunpack.c.l.b16 %v48
    %v464 = vunpack.c.l.b16 %v49
    %v465 = vunpack.c.l.b16 %v50
    %v466 = vunpack.c.l.b16 %v51
    %v467 = vunpack.c.l.b16 %v52
    %v468 = vunpack.c.l.b16 %v53
    %v469 = vunpack.c.l.b16 %v54
    %v470 = vunpack.c.l.b16 %v55
    %v471 = vunpack.c.l.b16 %v56
    %v472 = vunpack.c.l.b16 %v57
    %v473 = vunpack.c.l.b16 %v58
    %v474 = vunpack.c.l.b16 %v59
    %v475 = vunpack.c.l.b16 %v60
    %v476 = vunpack.c.l.b16 %v61
    %v477 = vunpack.c.l.b16 %v62
    %v478 = vunpack.c.l.b16 %v63
    %v479 = vunpack.c.l.b16 %v64
    %v480 = vunpack.c.l.b16 %v65
    %v481 = vunpack.c.l.b16 %v66
    %v482 = vunpack.c.l.b16 %v67
    %v483 = vunpack.c.l.b16 %v68
    %v484 = vunpack.c.l.b16 %v69
    %v485 = vunpack.c.l.b16 %v70
    %v486 = vunpack.c.l.b16 %v71
    %v487 = vunpack.c.l.b16 %v72
    %v488 = vunpack.c.l.b16 %v73
    %v489 = vunpack.c.l.b16 %v74
    %v490 = vunpack.c.l.b16 %v75
    %v491 = vunpack.c.l.b16 %v76
    %v492 = vunpack.c.l.b16 %v77
    %v493 = vunpack.c.l.b16 %v78
    %v494 = vunpack.c.l.b16 %v79
    %v495 = vunpack.c.l.b16 %v80
    %v496 = vunpack.c.l.b16 %v81
    %v497 = vunpack.c.l.b16 %v82
    %v498 = vunpack.c.l.b16 %v83
    %v499 = vunpack.c.l.b16 %v84
    %v500 = vunpack.c.l.b16 %v85
    %v501 = vunpack.c.l.b16 %v86
    %v502 = vunpack.c.l.b16 %v87
    %v503 = vunpack.c.l.b16 %v88
    %v504 = vunpack.c.l.b16 %v89
    %v505 = vunpack.c.l.b16 %v90
    %v506 = vunpack.c.l.b16 %v91
    %v507 = vunpack.c.l.b16 %v92
    %v508 = vunpack.c.l.b16 %v93
    %v509 = vunpack.c.l.b16 %v94
    %v510 = vunpack.c.l.b16 %v95
    %v511 = vunpack.c.l.b16 %v96
    %v512 = vunpack.c.l.b16 %v97
    %v513 = vunpack.c.l.b16 %v98
    %v514 = vunpack.c.l.b16 %v99
    %v515 = vunpack.c.l.b16 %v100
    %v516 = vunpack.c.l.b16 %v101
    %v517 = vunpack.c.l.b16 %v102
    %v518 = vunpack.c.l.b16 %v103
    %v519 = vunpack.c.l.b16 %v104
    %v520 = vunpack.c.l.b16 %v105
    %v521 = vunpack.c.l.b16 %v106
    %v522 = vunpack.c.l.b16 %v107
    %v523 = vunpack.c.l.b16 %v108
    %v524 = vunpack.c.l.b16 %v109
    %v525 = vunpack.c.l.b16 %v110
    %v526 = vunpack.c.l.b16 %v111
    %v527 = vunpack.c.l.b16 %v112
    %v528 = vunpack.c.l.b16 %v113
    %v529 = vunpack.c.l.b16 %v114
    %v530 = vunpack.c.l.b16 %v115
    %v531 = vunpack.c.l.b16 %v116
    %v532 = vunpack.c.l.b16 %v117
    %v533 = vunpack.c.l.b16 %v118
    %v534 = vunpack.c.l.b16 %v119
    %v535 = vunpack.c.l.b16 %v120
    %v536 = vunpack.c.l.b16 %v121
    %v537 = vunpack.c.l.b16 %v122
    %v538 = vunpack.c.l.b16 %v123
    %v539 = vunpack.c.l.b16 %v124
    %v540 = vunpack.c.l.b16 %v125
    %v541 = vunpack.c.l.b16 %v126
    %v542 = vunpack.c.l.b16 %v127
    %v543 = vunpack.c.l.b16 %v128
    %v544 = vunpack.c.l.b16 %v129
    %v545 = vunpack.c.l.b16 %v130
    %v546 = vunpack.c.l.b16 %v131
    %v547 = vunpack.c.l.b16 %v132
    %v548 = vunpack.c.l.b16 %v133
    %v549 = vunpack.c.l.b16 %v134
    %v550 = vunpack.c.l.b16 %v135
    %v551 = vunpack.c.l.b16 %v136
    %v552 = vunpack.c.l.b16 %v137
    %v553 = vunpack.c.l.b16 %v138
    %v554 = vunpack.c.l.b16 %v139
    %v555 = vunpack.c.l.b16 %v140
    %v556 = vunpack.c.l.b16 %v141
    %v557 = vunpack.c.l.b16 %v142
    %v558 = vunpack.c.l.b16 %v143
    %v559 = vunpack.c.l.b16 %v144
    %v560 = vunpack.c.l.b16 %v145
    %v561 = vunpack.c.l.b16 %v146
    %v562 = vunpack.c.l.b16 %v147
    %v563 = vunpack.c.l.b16 %v148
    %v564 = vunpack.c.l.b16 %v149
    %v565 = vunpack.c.l.b16 %v150
    %v566 = vunpack.c.l.b16 %v151
    %v567 = vunpack.c.l.b16 %v152
    %v568 = vunpack.c.l.b16 %v153
    %v569 = vunpack.c.l.b16 %v154
    %v570 = vunpack.c.l.b16 %v155
    %v571 = vunpack.c.l.b16 %v156
    %v572 = vunpack.c.l.b16 %v157
    %v573 = vpack.c.b16 %v446, %v445
    %v574 = vpack.c.b16 %v448, %v447
    %v575 = vpack.c.b16 %v450, %v449
    %v576 = vpack.c.b16 %v452, %v451
    %v577 = vpack.c.b16 %v454, %v453
    %v578 = vpack.c.b16 %v456, %v455
    %v579 = vpack.c.b16 %v458, %v457
    %v580 = vpack.c.b16 %v460, %v459
    %v581 = vpack.c.b16 %v462, %v461
    %v582 = vpack.c.b16 %v464, %v463
    %v583 = vpack.c.b16 %v466, %v465
    %v584 = vpack.c.b16 %v468, %v467
    %v585 = vpack.c.b16 %v470, %v469
    %v586 = vpack.c.b16 %v472, %v471
    %v587 = vpack.c.b16 %v474, %v473
    %v588 = vpack.c.b16 %v476, %v475
    %v589 = vpack.c.b16 %v478, %v477
    %v590 = vpack.c.b16 %v480, %v479
    %v591 = vpack.c.b16 %v482, %v481
    %v592 = vpack.c.b16 %v484, %v483
    %v593 = vpack.c.b16 %v486, %v485
    %v594 = vpack.c.b16 %v488, %v487
    %v595 = vpack.c.b16 %v490, %v489
    %v596 = vpack.c.b16 %v492, %v491
    %v597 = vpack.c.b16 %v494, %v493
    %v598 = vpack.c.b16 %v496, %v495
    %v599 = vpack.c.b16 %v498, %v497
    %v600 = vpack.c.b16 %v500, %v499
    %v601 = vpack.c.b16 %v502, %v501
    %v602 = vpack.c.b16 %v504, %v503
    %v603 = vpack.c.b16 %v506, %v505
    %v604 = vpack.c.b16 %v508, %v507
    %v605 = vpack.c.b16 %v510, %v509
    %v606 = vpack.c.b16 %v512, %v511
    %v607 = vpack.c.b16 %v514, %v513
    %v608 = vpack.c.b16 %v516, %v515
    %v609 = vpack.c.b16 %v518, %v517
    %v610 = vpack.c.b16 %v520, %v519
    %v611 = vpack.c.b16 %v522, %v521
    %v612 = vpack.c.b16 %v524, %v523
    %v613 = vpack.c.b16 %v526, %v525
    %v614 = vpack.c.b16 %v528, %v527
    %v615 = vpack.c.b16 %v530, %v529
    %v616 = vpack.c.b16 %v532, %v531
    %v617 = vpack.c.b16 %v534, %v533
    %v618 = vpack.c.b16 %v536, %v535
    %v619 = vpack.c.b16 %v538, %v537
    %v620 = vpack.c.b16 %v540, %v539
    %v621 = vpack.c.b16 %v542, %v541
    %v622 = vpack.c.b16 %v544, %v543
    %v623 = vpack.c.b16 %v546, %v545
    %v624 = vpack.c.b16 %v548, %v547
    %v625 = vpack.c.b16 %v550, %v549
    %v626 = vpack.c.b16 %v552, %v551
    %v627 = vpack.c.b16 %v554, %v553
    %v628 = vpack.c.b16 %v556, %v555
    %v629 = vpack.c.b16 %v558, %v557
    %v630 = vpack.c.b16 %v560, %v559
    %v631 = vpack.c.b16 %v562, %v561
    %v632 = vpack.c.b16 %v564, %v563
    %v633 = vpack.c.b16 %v566, %v565
    %v634 = vpack.c.b16 %v568, %v567
    %v635 = vpack.c.b16 %v570, %v569
    %v636 = vpack.c.b16 %v572, %v571
    %701 = vmatprep.subr.bf16.mxu0 0
    %702 = vmatpush1.bf16.msra.mxu0 %v573
    %703 = vmatprep.subr.bf16.mxu0 0
    %704 = vmatpush1.bf16.msra.mxu0 %v574
    %705 = vmatprep.subr.bf16.mxu0 0
    %706 = vmatpush1.bf16.msra.mxu0 %v575
    %707 = vmatprep.subr.bf16.mxu0 0
    %708 = vmatpush1.bf16.msra.mxu0 %v576
    %709 = vmatprep.subr.bf16.mxu0 0
    %710 = vmatpush1.bf16.msra.mxu0 %v577
    %711 = vmatprep.subr.bf16.mxu0 0
    %712 = vmatpush1.bf16.msra.mxu0 %v578
    %713 = vmatprep.subr.bf16.mxu0 0
    %714 = vmatpush1.bf16.msra.mxu0 %v579
    %715 = vmatprep.subr.bf16.mxu0 0
    %716 = vmatpush1.bf16.msra.mxu0 %v580
    %717 = vmatprep.subr.bf16.mxu0 0
    %718 = vmatpush1.bf16.msra.mxu0 %v581
    %719 = vmatprep.subr.bf16.mxu0 0
    %720 = vmatpush1.bf16.msra.mxu0 %v582
    %721 = vmatprep.subr.bf16.mxu0 0
    %722 = vmatpush1.bf16.msra.mxu0 %v583
    %723 = vmatprep.subr.bf16.mxu0 0
    %724 = vmatpush1.bf16.msra.mxu0 %v584
    %725 = vmatprep.subr.bf16.mxu0 0
    %726 = vmatpush1.bf16.msra.mxu0 %v585
    %727 = vmatprep.subr.bf16.mxu0 0
    %728 = vmatpush1.bf16.msra.mxu0 %v586
    %729 = vmatprep.subr.bf16.mxu0 0
    %730 = vmatpush1.bf16.msra.mxu0 %v587
    %731 = vmatprep.subr.bf16.mxu0 0
    %732 = vmatpush1.bf16.msra.mxu0 %v588
    %733 = vmatprep.mubr.bf16.mxu0 %v305
    %734 = vmatmul.mubr.bf16.gmra.mrb[0].mxu0 %v301
    %v735 = vpop.f32.mrb[0].mxu0
    %v736 = vadd.f32 %v163, %v735
    %v737 = vpop.f32.mrb[0].mxu0
    %v738 = vpop.f32.mrb[0].mxu0
    %v739 = vadd.f32 %v163, %v738
    %v740 = vpop.f32.mrb[0].mxu0
    %741 = vdwg.mxu0
    %742 = vmatprep.subr.bf16.mxu0 0
    %743 = vmatpush1.bf16.msra.mxu0 %v589
    %744 = vmatprep.subr.bf16.mxu0 0
    %745 = vmatpush1.bf16.msra.mxu0 %v590
    %746 = vmatprep.subr.bf16.mxu0 0
    %747 = vmatpush1.bf16.msra.mxu0 %v591
    %748 = vmatprep.subr.bf16.mxu0 0
    %749 = vmatpush1.bf16.msra.mxu0 %v592
    %750 = vmatprep.subr.bf16.mxu0 0
    %751 = vmatpush1.bf16.msra.mxu0 %v593
    %752 = vmatprep.subr.bf16.mxu0 0
    %753 = vmatpush1.bf16.msra.mxu0 %v594
    %754 = vmatprep.subr.bf16.mxu0 0
    %755 = vmatpush1.bf16.msra.mxu0 %v595
    %756 = vmatprep.subr.bf16.mxu0 0
    %757 = vmatpush1.bf16.msra.mxu0 %v596
    %758 = vmatprep.subr.bf16.mxu0 0
    %759 = vmatpush1.bf16.msra.mxu0 %v597
    %760 = vmatprep.subr.bf16.mxu0 0
    %761 = vmatpush1.bf16.msra.mxu0 %v598
    %762 = vmatprep.subr.bf16.mxu0 0
    %763 = vmatpush1.bf16.msra.mxu0 %v599
    %764 = vmatprep.subr.bf16.mxu0 0
    %765 = vmatpush1.bf16.msra.mxu0 %v600
    %766 = vmatprep.subr.bf16.mxu0 0
    %767 = vmatpush1.bf16.msra.mxu0 %v601
    %768 = vmatprep.subr.bf16.mxu0 0
    %769 = vmatpush1.bf16.msra.mxu0 %v602
    %770 = vmatprep.subr.bf16.mxu0 0
    %771 = vmatpush1.bf16.msra.mxu0 %v603
    %772 = vmatprep.subr.bf16.mxu0 0
    %773 = vmatpush1.bf16.msra.mxu0 %v604
    %774 = vmatprep.mubr.bf16.mxu0 %v306
    %775 = vmatmul.mubr.bf16.gmra.mrb[0].mxu0 %v302
    %v776 = vpop.f32.mrb[0].mxu0
    %v777 = vadd.f32 %v736, %v776
    %v778 = vpop.f32.mrb[0].mxu0
    %v779 = vpop.f32.mrb[0].mxu0
    %v780 = vadd.f32 %v739, %v779
    %v781 = vpop.f32.mrb[0].mxu0
    %782 = vdwg.mxu0
    %783 = vmatprep.subr.bf16.mxu0 0
    %784 = vmatpush1.bf16.msra.mxu0 %v605
    %785 = vmatprep.subr.bf16.mxu0 0
    %786 = vmatpush1.bf16.msra.mxu0 %v606
    %787 = vmatprep.subr.bf16.mxu0 0
    %788 = vmatpush1.bf16.msra.mxu0 %v607
    %789 = vmatprep.subr.bf16.mxu0 0
    %790 = vmatpush1.bf16.msra.mxu0 %v608
    %791 = vmatprep.subr.bf16.mxu0 0
    %792 = vmatpush1.bf16.msra.mxu0 %v609
    %793 = vmatprep.subr.bf16.mxu0 0
    %794 = vmatpush1.bf16.msra.mxu0 %v610
    %795 = vmatprep.subr.bf16.mxu0 0
    %796 = vmatpush1.bf16.msra.mxu0 %v611
    %797 = vmatprep.subr.bf16.mxu0 0
    %798 = vmatpush1.bf16.msra.mxu0 %v612
    %799 = vmatprep.subr.bf16.mxu0 0
    %800 = vmatpush1.bf16.msra.mxu0 %v613
    %801 = vmatprep.subr.bf16.mxu0 0
    %802 = vmatpush1.bf16.msra.mxu0 %v614
    %803 = vmatprep.subr.bf16.mxu0 0
    %804 = vmatpush1.bf16.msra.mxu0 %v615
    %805 = vmatprep.subr.bf16.mxu0 0
    %806 = vmatpush1.bf16.msra.mxu0 %v616
    %807 = vmatprep.subr.bf16.mxu0 0
    %808 = vmatpush1.bf16.msra.mxu0 %v617
    %809 = vmatprep.subr.bf16.mxu0 0
    %810 = vmatpush1.bf16.msra.mxu0 %v618
    %811 = vmatprep.subr.bf16.mxu0 0
    %812 = vmatpush1.bf16.msra.mxu0 %v619
    %813 = vmatprep.subr.bf16.mxu0 0
    %814 = vmatpush1.bf16.msra.mxu0 %v620
    %815 = vmatprep.mubr.bf16.mxu0 %v307
    %816 = vmatmul.mubr.bf16.gmra.mrb[0].mxu0 %v303
    %v817 = vpop.f32.mrb[0].mxu0
    %v818 = vadd.f32 %v777, %v817
    %v819 = vpop.f32.mrb[0].mxu0
    %v820 = vpop.f32.mrb[0].mxu0
    %v821 = vadd.f32 %v780, %v820
    %v822 = vpop.f32.mrb[0].mxu0
    %823 = vdwg.mxu0
    %824 = vmatprep.subr.bf16.mxu0 0
    %825 = vmatpush1.bf16.msra.mxu0 %v621
    %826 = vmatprep.subr.bf16.mxu0 0
    %827 = vmatpush1.bf16.msra.mxu0 %v622
    %828 = vmatprep.subr.bf16.mxu0 0
    %829 = vmatpush1.bf16.msra.mxu0 %v623
    %830 = vmatprep.subr.bf16.mxu0 0
    %831 = vmatpush1.bf16.msra.mxu0 %v624
    %832 = vmatprep.subr.bf16.mxu0 0
    %833 = vmatpush1.bf16.msra.mxu0 %v625
    %834 = vmatprep.subr.bf16.mxu0 0
    %835 = vmatpush1.bf16.msra.mxu0 %v626
    %836 = vmatprep.subr.bf16.mxu0 0
    %837 = vmatpush1.bf16.msra.mxu0 %v627
    %838 = vmatprep.subr.bf16.mxu0 0
    %839 = vmatpush1.bf16.msra.mxu0 %v628
    %840 = vmatprep.subr.bf16.mxu0 0
    %841 = vmatpush1.bf16.msra.mxu0 %v629
    %842 = vmatprep.subr.bf16.mxu0 0
    %843 = vmatpush1.bf16.msra.mxu0 %v630
    %844 = vmatprep.subr.bf16.mxu0 0
    %845 = vmatpush1.bf16.msra.mxu0 %v631
    %846 = vmatprep.subr.bf16.mxu0 0
    %847 = vmatpush1.bf16.msra.mxu0 %v632
    %848 = vmatprep.subr.bf16.mxu0 0
    %849 = vmatpush1.bf16.msra.mxu0 %v633
    %850 = vmatprep.subr.bf16.mxu0 0
    %851 = vmatpush1.bf16.msra.mxu0 %v634
    %852 = vmatprep.subr.bf16.mxu0 0
    %853 = vmatpush1.bf16.msra.mxu0 %v635
    %854 = vmatprep.subr.bf16.mxu0 0
    %855 = vmatpush1.bf16.msra.mxu0 %v636
    %856 = vmatprep.mubr.bf16.mxu0 %v308
    %857 = vmatmul.mubr.bf16.gmra.mrb[0].mxu0 %v304
    %v858 = vpop.f32.mrb[0].mxu0
    %v859 = vadd.f32 %v818, %v858
    %v860 = vpop.f32.mrb[0].mxu0
    %v861 = vpop.f32.mrb[0].mxu0
    %v862 = vadd.f32 %v821, %v861
    %v863 = vpop.f32.mrb[0].mxu0
    %864 = vdwg.mxu0
    %v865 = vxor.u32 %v859, 2147483648
    %v866 = vxor.u32 %v862, 2147483648
    %v867 = vmul.f32 %v865, 1.442695
    %v868 = vpow.pop %v867
    %v869 = vmul.f32 %v866, 1.442695
    %v870 = vpow.pop %v869
    %v871 = vadd.f32 %v868, 1.0
    %v872 = vadd.f32 %v870, 1.0
    %v873 = vrcp.pop %v871
    %v874 = vmul.f32 1.0, %v873
    %v875 = vrcp.pop %v872
    %v876 = vmul.f32 1.0, %v875
    %v877 = vld [vmem:[%s3] sm:$0xff]
    %v878 = vld [vmem:[%s3 + $0x8] sm:$0xff]
    %v879 = vld [vmem:[%s3 + $0x10] sm:$0xff]
    %v880 = vld [vmem:[%s3 + $0x18] sm:$0xff]
    %v881 = vld [vmem:[%s4] sm:$0x1]
    %v883 = vlaneseq
    %v884 = vshrl.u32 %v883, 7
    %v885 = vsub.s32 0, %v884
    %v886 = vrot.slane %v881, %v885
    %vm888 = vcmask 261120
    %v890 = vsel %vm888, %v874, 0
    %v893 = vsel %vm888, %v876, 0
    %895 = vmatprep.subr.mxu0 0.0
    %896 = vmatpush1.msra.mxu0 %v877
    %897 = vmatprep.subr.mxu0 0.0
    %898 = vmatpush1.msra.mxu0 %v878
    %899 = vmatprep.subr.mxu0 0.0
    %900 = vmatpush1.msra.mxu0 %v879
    %901 = vmatprep.subr.mxu0 0.0
    %902 = vmatpush1.msra.mxu0 %v880
    %903 = vmatprep.subr.mxu0 0.0
    %904 = vmatpush1.msra.mxu0 0.0
    %905 = vmatprep.subr.mxu0 0.0
    %906 = vmatpush1.msra.mxu0 0.0
    %907 = vmatprep.subr.mxu0 0.0
    %908 = vmatpush1.msra.mxu0 0.0
    %909 = vmatprep.subr.mxu0 0.0
    %910 = vmatpush1.msra.mxu0 0.0
    %911 = vmatprep.subr.mxu0 0.0
    %912 = vmatpush1.msra.mxu0 0.0
    %913 = vmatprep.subr.mxu0 0.0
    %914 = vmatpush1.msra.mxu0 0.0
    %915 = vmatprep.subr.mxu0 0.0
    %916 = vmatpush1.msra.mxu0 0.0
    %917 = vmatprep.subr.mxu0 0.0
    %918 = vmatpush1.msra.mxu0 0.0
    %919 = vmatprep.subr.mxu0 0.0
    %920 = vmatpush1.msra.mxu0 0.0
    %921 = vmatprep.subr.mxu0 0.0
    %922 = vmatpush1.msra.mxu0 0.0
    %923 = vmatprep.subr.mxu0 0.0
    %924 = vmatpush1.msra.mxu0 0.0
    %925 = vmatprep.subr.mxu0 0.0
    %926 = vmatpush1.msra.mxu0 0.0
    %927 = vmatprep.subr.mxu0 0.0
    %928 = vmatpush1.msra.mxu0 0.0
    %929 = vmatprep.subr.mxu0 0.0
    %930 = vmatpush1.msra.mxu0 0.0
    %931 = vmatprep.subr.mxu0 0.0
    %932 = vmatpush1.msra.mxu0 0.0
    %933 = vmatprep.subr.mxu0 0.0
    %934 = vmatpush1.msra.mxu0 0.0
    %935 = vmatprep.subr.mxu0 0.0
    %936 = vmatpush1.msra.mxu0 0.0
    %937 = vmatprep.subr.mxu0 0.0
    %938 = vmatpush1.msra.mxu0 0.0
    %939 = vmatprep.subr.mxu0 0.0
    %940 = vmatpush1.msra.mxu0 0.0
    %941 = vmatprep.subr.mxu0 0.0
    %942 = vmatpush1.msra.mxu0 0.0
    %943 = vmatprep.subr.mxu0 0.0
    %944 = vmatpush1.msra.mxu0 0.0
    %945 = vmatprep.subr.mxu0 0.0
    %946 = vmatpush1.msra.mxu0 0.0
    %947 = vmatprep.subr.mxu0 0.0
    %948 = vmatpush1.msra.mxu0 0.0
    %949 = vmatprep.subr.mxu0 0.0
    %950 = vmatpush1.msra.mxu0 0.0
    %951 = vmatprep.subr.mxu0 0.0
    %952 = vmatpush1.msra.mxu0 0.0
    %953 = vmatprep.subr.mxu0 0.0
    %954 = vmatpush1.msra.mxu0 0.0
    %955 = vmatprep.subr.mxu0 0.0
    %956 = vmatpush1.msra.mxu0 0.0
    %957 = vmatprep.subr.mxu0 0.0
    %958 = vmatpush1.msra.mxu0 0.0
    %959 = vmatprep.mubr.f32.mxu0 0.0
    %960 = vmatmul.mubr.f32.gmra.mrb[0].mxu0 %v890
    %v961 = vpop.f32.mrb[0].mxu0
    %v962 = vadd.f32 %v886, %v961
    %v963 = vpop.f32.mrb[0].mxu0
    %964 = vmatprep.mubr.f32.mxu0 0.0
    %965 = vmatmul.mubr.f32.gmra.mrb[0].mxu0 %v893
    %v966 = vpop.f32.mrb[0].mxu0
    %v967 = vadd.f32 %v886, %v966
    %v968 = vpop.f32.mrb[0].mxu0
    %969 = vdwg.mxu0
    %970 = vst [vmem:[#allocation2] sm:$0xff] %v962
    %971 = vst [vmem:[#allocation2 + $0x8] sm:$0xff] %v967
    // Predicated region
    $region22: #{tpu_custom_call.1} parent=1 // pred_check
      _
    $region23: #{tpu_custom_call.1} parent=1 // pred_check_branch
      %973 = sbr.rel (0) target = $region25
    $region24: #{tpu_custom_call.1} parent=1 // pred_region
      %s975 = ssub.s32 256, 32
      %976 = vsyncadd [#allocation3], %s975
      %s977 = sshll.u32 [#allocation2], 4
      %s978 = int_to_ptr.vmem [resolvable:$true] %s977
      %983 = dma.vmem_to_hbm [thread:$0]  %s978, 32, %s5, [#allocation3], 32, 32, 2
    $region25: #{tpu_custom_call.1} parent=1 // pred_fallthru
      _
    // Predicated region
    $region26: #{tpu_custom_call.1} parent=1 // pred_check
      _
    $region27: #{tpu_custom_call.1} parent=1 // pred_check_branch
      %985 = sbr.rel (0) target = $region29
    $region28: #{tpu_custom_call.1} parent=1 // pred_region
      %986 = dma.done [#allocation3], 256
    $region29: #{tpu_custom_call.1} parent=1 // pred_fallthru
      _
    %987 = vsyncpa [#allocation3], 1

</llo_original>
